<compile_context>
chip_gen: v5e
topology: v5e:2x2
jax: 0.10.0
libtpu: 0.0.40
codegen_flags: <defaults>
</compile_context>

<pallas_src>
import jax
import jax.numpy as jnp
from jax.experimental import pallas as pl
from jax.experimental.pallas import tpu as pltpu


def _round_up(x, m):
    return ((x + m - 1) // m) * m


def _isomax_kernel(t_ref, x_ref, p_ref, o_ref):
    # t_ref : SMEM (1,) float32         -- temperature
    # x_ref : VMEM (TB, Fp)             -- batch tile of features
    # p_ref : VMEM (TC, Fp)             -- class tile of prototypes
    # o_ref : VMEM (TB, TC)             -- logits tile (lane-dense: TC % 128 == 0)
    x = x_ref[...]                                   # native dtype -> MXU
    p = p_ref[...]

    # Self-norms in f32 (cheap: O(TB*Fp) + O(TC*Fp) vs O(TB*TC*Fp) matmul).
    xf = x.astype(jnp.float32)
    pf = p.astype(jnp.float32)
    x2 = jnp.sum(xf * xf, axis=-1, keepdims=True)    # (TB, 1)
    p2 = jnp.sum(pf * pf, axis=-1, keepdims=True)    # (TC, 1)

    # Cross term on the MXU with f32 accumulation.
    xp = jnp.dot(x, p.T, preferred_element_type=jnp.float32)   # (TB, TC)

    # ||x - p||^2 = ||x||^2 + ||p||^2 - 2 x.p ; clamp tiny negatives from rounding.
    d2 = jnp.maximum(x2 + p2.T - 2.0 * xp, 0.0)
    dist = jnp.sqrt(d2)

    neg_inv_t = -1.0 / t_ref[0]
    o_ref[...] = (dist * neg_inv_t).astype(o_ref.dtype)


def _choose_tiles(B, C, F, itemsize, budget_bytes=24 << 20):
    """Pick (tb, tc, Fp) so double-buffered tiles fit a conservative VMEM budget."""
    Fp = _round_up(F, 128)
    tb = min(_round_up(B, 8), 512)      # batch tile, multiple of 8
    tc = min(_round_up(C, 128), 512)    # class tile, multiple of 128 (lane-dense out)

    def bytes_needed(tb_, tc_):
        # double-buffered x tile + p tile + out tile (itemsize of real dtype)
        return 2 * (tb_ * Fp + tc_ * Fp + tb_ * tc_) * itemsize

    while bytes_needed(tb, tc) > budget_bytes and (tb > 8 or tc > 128):
        if tb >= tc and tb > 8:
            tb = max(8, (tb // 2 // 8) * 8)
        elif tc > 128:
            tc = max(128, (tc // 2 // 128) * 128)
        else:
            break
    return tb, tc, Fp


def isomax_first_part(features, prototypes, temperature, *, tb=None, tc=None):
    """features: [B, F], prototypes: [C, F], temperature: [1] -> logits [B, C]."""
    B, F = features.shape
    C, Fp_in = prototypes.shape
    assert F == Fp_in, "feature dims must match"

    itemsize = jnp.dtype(features.dtype).itemsize
    tb_auto, tc_auto, Fp = _choose_tiles(B, C, F, itemsize)
    tb = tb_auto if tb is None else _round_up(tb, 8)
    tc = tc_auto if tc is None else _round_up(tc, 128)

    Bp = _round_up(B, tb)
    Cp = _round_up(C, tc)

    # Zero-pad: feature-dim zeros contribute nothing to squared distances;
    # padded rows / classes are sliced off below.
    x = features
    if (Bp, Fp) != (B, F):
        x = jnp.pad(x, ((0, Bp - B), (0, Fp - F)))
    p = prototypes
    if (Cp, Fp) != (C, F):
        p = jnp.pad(p, ((0, Cp - C), (0, Fp - F)))
    t = jnp.asarray(temperature, dtype=jnp.float32).reshape((1,))

    grid = (Bp // tb, Cp // tc)

    out = pl.pallas_call(
        _isomax_kernel,
        out_shape=jax.ShapeDtypeStruct((Bp, Cp), features.dtype),
        grid_spec=pltpu.PrefetchScalarGridSpec(
            num_scalar_prefetch=0,
            grid=grid,
            in_specs=[
                # temperature scalar lives in SMEM
                pl.BlockSpec(memory_space=pltpu.MemorySpace.SMEM),
                # batch tile of features
                pl.BlockSpec((tb, Fp), lambda i, j: (i, 0)),
                # class tile of prototypes
                pl.BlockSpec((tc, Fp), lambda i, j: (j, 0)),
            ],
            out_specs=pl.BlockSpec((tb, tc), lambda i, j: (i, j)),
        ),
        compiler_params=pltpu.CompilerParams(
            dimension_semantics=("parallel", "parallel"),
            vmem_limit_bytes=32 * 1024 * 1024,
        ),
        cost_estimate=pl.CostEstimate(
            flops=2 * Bp * Cp * Fp,
            transcendentals=Bp * Cp,
            bytes_accessed=(Bp * Fp + Cp * Fp + Bp * Cp) * itemsize,
        ),
    )(t, x, p)

    return out[:B, :C]


def isomax_reference(features, prototypes, temperature):
    diff = (features[:, None, :].astype(jnp.float32)
            - prototypes[None, :, :].astype(jnp.float32))
    dist = jnp.sqrt(jnp.sum(diff * diff, axis=-1))
    return (-dist / temperature[0]).astype(features.dtype)


if __name__ == "__main__":
    # Module config (small, consistent with IsoMaxLossFirstPart.__init__):
    num_features = 128
    num_classes = 16
    batch = 8

    key = jax.random.PRNGKey(0)
    features = jax.random.normal(key, (batch, num_features), dtype=jnp.float32)

    # Deterministic parameter init, exactly as in the nn.Module:
    #   prototypes <- constant 0.0, temperature <- [1.0]
    prototypes = jnp.zeros((num_classes, num_features), dtype=jnp.float32)
    temperature = jnp.array([1.0], dtype=jnp.float32)

    logits = isomax_first_part(features, prototypes, temperature)
    logits = jax.block_until_ready(logits)

    ref = isomax_reference(features, prototypes, temperature)
    assert logits.shape == (batch, num_classes)
    # MXU expansion differs from the exact diff path by a few ULPs only.
    assert jnp.allclose(logits, ref, atol=1e-4, rtol=1e-4), "mismatch vs reference"

    print("KERNEL_OK")
</pallas_src>

<mosaic_0001>
module attributes {stable_mosaic.version = 11 : i64} {
  func.func @_isomax_kernel(%arg0: i32, %arg1: i32, %arg2: memref<1xf32, #tpu.memory_space<smem>>, %arg3: memref<8x128xf32, #tpu.memory_space<vmem>>, %arg4: memref<128x128xf32, #tpu.memory_space<vmem>>, %arg5: memref<8x128xf32, #tpu.memory_space<vmem>>) attributes {dimension_semantics = [#tpu.dimension_semantics<parallel>, #tpu.dimension_semantics<parallel>], iteration_bounds = array<i64: 1, 1>, scalar_prefetch = 0 : i64, scratch_operands = 0 : i64, tpu.core_type = #tpu.core_type<tc>, window_params = [{transform_indices = @transform_0, window_bounds = array<i64: 1>}, {transform_indices = @transform_1, window_bounds = array<i64: 8, 128>}, {transform_indices = @transform_2, window_bounds = array<i64: 128, 128>}, {transform_indices = @transform_3, window_bounds = array<i64: 8, 128>}]} {
    %c0 = arith.constant 0 : index
    %c0_0 = arith.constant 0 : index
    %0 = vector.load %arg3[%c0, %c0_0] : memref<8x128xf32, #tpu.memory_space<vmem>>, vector<8x128xf32>
    %c0_1 = arith.constant 0 : index
    %c0_2 = arith.constant 0 : index
    %1 = vector.load %arg4[%c0_1, %c0_2] : memref<128x128xf32, #tpu.memory_space<vmem>>, vector<128x128xf32>
    %2 = arith.mulf %0, %0 : vector<8x128xf32>
    %cst = arith.constant dense<0.000000e+00> : vector<8xf32>
    %3 = vector.multi_reduction <add>, %2, %cst [1] : vector<8x128xf32> to vector<8xf32>
    %4 = vector.shape_cast %3 : vector<8xf32> to vector<8x1xf32>
    %5 = arith.mulf %1, %1 : vector<128x128xf32>
    %cst_3 = arith.constant dense<0.000000e+00> : vector<128xf32>
    %6 = vector.multi_reduction <add>, %5, %cst_3 [1] : vector<128x128xf32> to vector<128xf32>
    %7 = vector.shape_cast %6 : vector<128xf32> to vector<128x1xf32>
    %8 = tpu.transpose %1, [1, 0] : vector<128x128xf32> -> vector<128x128xf32>
    %cst_4 = arith.constant dense<0.000000e+00> : vector<8x128xf32>
    %9 = tpu.matmul %0, %8, %cst_4 {dimension_numbers = #tpu.dot_dimension_numbers<[1], [0], [0], [1], [0, 0, 1, 1], [], []>} : vector<8x128xf32>, vector<128x128xf32>, vector<8x128xf32> -> vector<8x128xf32>
    %10 = tpu.transpose %7, [1, 0] : vector<128x1xf32> -> vector<1x128xf32>
    %11 = vector.broadcast %4 : vector<8x1xf32> to vector<8x128xf32>
    %12 = vector.broadcast %10 : vector<1x128xf32> to vector<8x128xf32>
    %13 = arith.addf %11, %12 : vector<8x128xf32>
    %cst_5 = arith.constant 2.000000e+00 : f32
    %14 = vector.broadcast %cst_5 : f32 to vector<8x128xf32>
    %15 = arith.mulf %14, %9 : vector<8x128xf32>
    %16 = arith.subf %13, %15 : vector<8x128xf32>
    %cst_6 = arith.constant 0.000000e+00 : f32
    %17 = vector.broadcast %cst_6 : f32 to vector<8x128xf32>
    %18 = arith.maximumf %16, %17 : vector<8x128xf32>
    %19 = math.sqrt %18 : vector<8x128xf32>
    %c0_7 = arith.constant 0 : index
    %20 = memref.load %arg2[%c0_7] : memref<1xf32, #tpu.memory_space<smem>>
    %cst_8 = arith.constant -1.000000e+00 : f32
    %21 = arith.divf %cst_8, %20 : f32
    %22 = vector.broadcast %21 : f32 to vector<8x128xf32>
    %23 = arith.mulf %19, %22 : vector<8x128xf32>
    %c0_9 = arith.constant 0 : index
    %c0_10 = arith.constant 0 : index
    %24 = vector.load %arg5[%c0_9, %c0_10] : memref<8x128xf32, #tpu.memory_space<vmem>>, vector<8x128xf32>
    tpu.vector_store %arg5[%c0_9, %c0_10], %23 {strides = array<i32>} : memref<8x128xf32, #tpu.memory_space<vmem>>, vector<8x128xf32>,
    return
  }
  func.func @transform_0(%arg0: i32, %arg1: i32) -> i32 {
    %c0_i32 = arith.constant 0 : i32
    %c0_i32_0 = arith.constant 0 : i32
    return %c0_i32 : i32
  }
  func.func @transform_1(%arg0: i32, %arg1: i32) -> (i32, i32) {
    %c0_i32 = arith.constant 0 : i32
    %c0_i32_0 = arith.constant 0 : i32
    return %arg0, %c0_i32 : i32, i32
  }
  func.func @transform_2(%arg0: i32, %arg1: i32) -> (i32, i32) {
    %c0_i32 = arith.constant 0 : i32
    %c0_i32_0 = arith.constant 0 : i32
    return %arg1, %c0_i32 : i32, i32
  }
  func.func @transform_3(%arg0: i32, %arg1: i32) -> (i32, i32) {
    %c0_i32 = arith.constant 0 : i32
    return %arg0, %arg1 : i32, i32
  }
}

</mosaic_0001>

<llo_original>
// kernel: tpu_custom_call.1
$region0: #{tpu_custom_call.1}
  #allocation0 [shape = 'u32[]', space=smem, size = 0x4, offset = 0x4, fixed_abs, tag = 'smem constant byte address 0x4 - core index']
  #allocation1 [shape = 'u32[72,128]{1,0:T(1,128)}', space=vmem, size = 0x9000, scoped, tag = 'internal scratch']
  #allocation2 [shape = 'f32[1]{0:T(128)S(6)}', space=smem, size = 0x200, scoped, tag = 'scoped memory for tpu_custom_call.1']
  %s0 = inlined_call_operand.<no memory space> [shape: f32[1], index: 0, kind: input, shape index: {}]
  %s1 = inlined_call_operand.hbm [shape: f32[8,128], index: 1, kind: input, shape index: {}]
  %s2 = inlined_call_operand.hbm [shape: f32[128,128], index: 2, kind: input, shape index: {}]
  %s3 = inlined_call_operand.hbm [shape: f32[8,128], index: 3, kind: output, shape index: {}]
  %s4 = sld [smem:[#allocation0]]
  $region30: #{tpu_custom_call.1} parent=0
    _
  %s6 = ssub.s32 1, %s4
  %s7 = scalar_select 0, %s6, %s4
  %8 = sst [smem:[#allocation2]] %s0
  $region1: #{tpu_custom_call.1} parent=0
    #allocation3 [shape = 'u8[4096]{0}', space=vmem, size = 0x1000, scoped, tag = 'input window, operand 1, single buffered']
    #allocation4 [shape = 's32[1]{0}', space=sflag, size = 0x4, scoped, tag = 'scoped memory for tpu_custom_call.1']
    #allocation5 [shape = 's32[1]{0}', space=sflag, size = 0x4, scoped, tag = 'scoped memory for tpu_custom_call.1']
    #allocation6 [shape = 'u8[65536]{0}', space=vmem, size = 0x10000, scoped, tag = 'input window, operand 2, single buffered']
    #allocation7 [shape = 's32[1]{0}', space=sflag, size = 0x4, scoped, tag = 'scoped memory for tpu_custom_call.1']
    #allocation8 [shape = 'u8[4096]{0}', space=vmem, size = 0x1000, scoped, tag = 'output window, operand 0, single buffered']
    %9 = vsyncpa [#allocation4], 0
    %10 = vsyncpa [#allocation7], 0
    %11 = vsyncpa [#allocation5], 0
    // Predicated region
    $region2: #{tpu_custom_call.1} parent=1 // pred_check
      _
    $region3: #{tpu_custom_call.1} parent=1 // pred_check_branch
      %13 = sbr.rel (0) target = $region5
    $region4: #{tpu_custom_call.1} parent=1 // pred_region
      _
    $region5: #{tpu_custom_call.1} parent=1 // pred_fallthru
      _
    // Predicated region
    $region6: #{tpu_custom_call.1} parent=1 // pred_check
      _
    $region7: #{tpu_custom_call.1} parent=1 // pred_check_branch
      %15 = sbr.rel (0) target = $region9
    $region8: #{tpu_custom_call.1} parent=1 // pred_region
      %17 = vsyncadd [#allocation4], 0
      %s19 = sshll.u32 %s1, 4
      %s20 = int_to_ptr.hbm [resolvable:$true] %s19
      %s21 = sshll.u32 [#allocation3], 4
      %s22 = int_to_ptr.vmem [resolvable:$true] %s21
      %24 = dma.hbm_to_vmem [thread:$0]  %s20, 128, %s22, [#allocation4]
    $region9: #{tpu_custom_call.1} parent=1 // pred_fallthru
      _
    // Predicated region
    $region10: #{tpu_custom_call.1} parent=1 // pred_check
      _
    $region11: #{tpu_custom_call.1} parent=1 // pred_check_branch
      %26 = sbr.rel (0) target = $region13
    $region12: #{tpu_custom_call.1} parent=1 // pred_region
      %28 = vsyncadd [#allocation7], 0
      %s29 = sshll.u32 %s2, 4
      %s30 = int_to_ptr.hbm [resolvable:$true] %s29
      %s31 = sshll.u32 [#allocation6], 4
      %s32 = int_to_ptr.vmem [resolvable:$true] %s31
      %37 = dma.hbm_to_vmem [thread:$0]  %s30, 2048, %s32, [#allocation7], 128, 128, 8
    $region13: #{tpu_custom_call.1} parent=1 // pred_fallthru
      _
    // Predicated region
    $region14: #{tpu_custom_call.1} parent=1 // pred_check
      _
    $region15: #{tpu_custom_call.1} parent=1 // pred_check_branch
      %39 = sbr.rel (0) target = $region17
    $region16: #{tpu_custom_call.1} parent=1 // pred_region
      %41 = dma.done [#allocation4], 128
    $region17: #{tpu_custom_call.1} parent=1 // pred_fallthru
      _
    // Predicated region
    $region18: #{tpu_custom_call.1} parent=1 // pred_check
      _
    $region19: #{tpu_custom_call.1} parent=1 // pred_check_branch
      %43 = sbr.rel (0) target = $region21
    $region20: #{tpu_custom_call.1} parent=1 // pred_region
      %45 = dma.done [#allocation7], 2048
    $region21: #{tpu_custom_call.1} parent=1 // pred_fallthru
      _
    %v46 = vld [vmem:[#allocation3] sm:$0xff]
    %v47 = vld [vmem:[#allocation6] sm:$0xff]
    %v48 = vld [vmem:[#allocation6 + $0x8] sm:$0xff]
    %v49 = vld [vmem:[#allocation6 + $0x10] sm:$0xff]
    %v50 = vld [vmem:[#allocation6 + $0x18] sm:$0xff]
    %v51 = vld [vmem:[#allocation6 + $0x20] sm:$0xff]
    %v52 = vld [vmem:[#allocation6 + $0x28] sm:$0xff]
    %v53 = vld [vmem:[#allocation6 + $0x30] sm:$0xff]
    %v54 = vld [vmem:[#allocation6 + $0x38] sm:$0xff]
    %v55 = vld [vmem:[#allocation6 + $0x40] sm:$0xff]
    %v56 = vld [vmem:[#allocation6 + $0x48] sm:$0xff]
    %v57 = vld [vmem:[#allocation6 + $0x50] sm:$0xff]
    %v58 = vld [vmem:[#allocation6 + $0x58] sm:$0xff]
    %v59 = vld [vmem:[#allocation6 + $0x60] sm:$0xff]
    %v60 = vld [vmem:[#allocation6 + $0x68] sm:$0xff]
    %v61 = vld [vmem:[#allocation6 + $0x70] sm:$0xff]
    %v62 = vld [vmem:[#allocation6 + $0x78] sm:$0xff]
    %v63 = vmul.f32 %v46, %v46
    %64 = vadd.xlane.f32.xlu0 %v63
    %v65 = vpop.xlane.xlu0 %64
    %v66 = vmul.f32 %v47, %v47
    %v67 = vmul.f32 %v48, %v48
    %v68 = vmul.f32 %v49, %v49
    %v69 = vmul.f32 %v50, %v50
    %v70 = vmul.f32 %v51, %v51
    %v71 = vmul.f32 %v52, %v52
    %v72 = vmul.f32 %v53, %v53
    %v73 = vmul.f32 %v54, %v54
    %v74 = vmul.f32 %v55, %v55
    %v75 = vmul.f32 %v56, %v56
    %v76 = vmul.f32 %v57, %v57
    %v77 = vmul.f32 %v58, %v58
    %v78 = vmul.f32 %v59, %v59
    %v79 = vmul.f32 %v60, %v60
    %v80 = vmul.f32 %v61, %v61
    %v81 = vmul.f32 %v62, %v62
    %82 = vadd.xlane.f32.xlu0 %v66
    %v83 = vpop.xlane.xlu0 %82
    %84 = vadd.xlane.f32.xlu0 %v67
    %v85 = vpop.xlane.xlu0 %84
    %86 = vadd.xlane.f32.xlu0 %v68
    %v87 = vpop.xlane.xlu0 %86
    %88 = vadd.xlane.f32.xlu0 %v69
    %v89 = vpop.xlane.xlu0 %88
    %90 = vadd.xlane.f32.xlu0 %v70
    %v91 = vpop.xlane.xlu0 %90
    %92 = vadd.xlane.f32.xlu0 %v71
    %v93 = vpop.xlane.xlu0 %92
    %94 = vadd.xlane.f32.xlu0 %v72
    %v95 = vpop.xlane.xlu0 %94
    %96 = vadd.xlane.f32.xlu0 %v73
    %v97 = vpop.xlane.xlu0 %96
    %98 = vadd.xlane.f32.xlu0 %v74
    %v99 = vpop.xlane.xlu0 %98
    %100 = vadd.xlane.f32.xlu0 %v75
    %v101 = vpop.xlane.xlu0 %100
    %102 = vadd.xlane.f32.xlu0 %v76
    %v103 = vpop.xlane.xlu0 %102
    %104 = vadd.xlane.f32.xlu0 %v77
    %v105 = vpop.xlane.xlu0 %104
    %106 = vadd.xlane.f32.xlu0 %v78
    %v107 = vpop.xlane.xlu0 %106
    %108 = vadd.xlane.f32.xlu0 %v79
    %v109 = vpop.xlane.xlu0 %108
    %110 = vadd.xlane.f32.xlu0 %v80
    %v111 = vpop.xlane.xlu0 %110
    %112 = vadd.xlane.f32.xlu0 %v81
    %v113 = vpop.xlane.xlu0 %112
    %114 = vmatpush.xpose.msra.mxu0 %v62
    %115 = vmatpush.xpose.msra.mxu0 %v61
    %116 = vmatpush.xpose.msra.mxu0 %v60
    %117 = vmatpush.xpose.msra.mxu0 %v59
    %118 = vmatpush.xpose.msra.mxu0 %v58
    %119 = vmatpush.xpose.msra.mxu0 %v57
    %120 = vmatpush.xpose.msra.mxu0 %v56
    %121 = vmatpush.xpose.msra.mxu0 %v55
    %122 = vmatpush.xpose.msra.mxu0 %v54
    %123 = vmatpush.xpose.msra.mxu0 %v53
    %124 = vmatpush.xpose.msra.mxu0 %v52
    %125 = vmatpush.xpose.msra.mxu0 %v51
    %126 = vmatpush.xpose.msra.mxu0 %v50
    %127 = vmatpush.xpose.msra.mxu0 %v49
    %128 = vmatpush.xpose.msra.mxu0 %v48
    %129 = vmatpush.xpose.msra.mxu0 %v47
    %130 = vmatmul.f32.gmra.mxu0 %v46
    %v131 = vpop.f32.mrf.mxu0
    %v132 = vadd.f32 0.0, %v131
    %133 = vdwg.mxu0
    %134 = vxpose.xlu0.b32.start [1/16] %v83, 128
    %135 = vxpose.xlu0.b32.cont [2/16] %v85, 128
    %136 = vxpose.xlu0.b32.cont [3/16] %v87, 128
    %137 = vxpose.xlu0.b32.cont [4/16] %v89, 128
    %138 = vxpose.xlu0.b32.cont [5/16] %v91, 128
    %139 = vxpose.xlu0.b32.cont [6/16] %v93, 128
    %140 = vxpose.xlu0.b32.cont [7/16] %v95, 128
    %141 = vxpose.xlu0.b32.cont [8/16] %v97, 128
    %142 = vxpose.xlu0.b32.cont [9/16] %v99, 128
    %143 = vxpose.xlu0.b32.cont [10/16] %v101, 128
    %144 = vxpose.xlu0.b32.cont [11/16] %v103, 128
    %145 = vxpose.xlu0.b32.cont [12/16] %v105, 128
    %146 = vxpose.xlu0.b32.cont [13/16] %v107, 128
    %147 = vxpose.xlu0.b32.cont [14/16] %v109, 128
    %148 = vxpose.xlu0.b32.cont [15/16] %v111, 128
    %149 = vxpose.xlu0.b32.end [16/16] %v113, 128
    %v150 = vpop.trf.xlu0
    %v151 = vpop.trf.xlu0
    %v152 = vpop.trf.xlu0
    %v153 = vpop.trf.xlu0
    %v154 = vpop.trf.xlu0
    %v155 = vpop.trf.xlu0
    %v156 = vpop.trf.xlu0
    %v157 = vpop.trf.xlu0
    %v158 = vpop.trf.xlu0
    %v159 = vpop.trf.xlu0
    %v160 = vpop.trf.xlu0
    %v161 = vpop.trf.xlu0
    %v162 = vpop.trf.xlu0
    %v163 = vpop.trf.xlu0
    %v164 = vpop.trf.xlu0
    %v165 = vpop.trf.xlu0
    %v166 = vperm.slane %v150, 0
    %v167 = vadd.f32 %v65, %v166
    %v168 = vmul.f32 %v132, 2.0
    %v169 = vsub.f32 %v167, %v168
    %v170 = vmax.f32 %v169, 0.0
    %v171 = vrsqrt.pop %v170
    %v172 = vmul.f32 %v171, %v170
    %v173 = vmul.f32 %v172, %v171
    %v174 = vmul.f32 0.5, %v173
    %v175 = vsub.f32 1.5, %v174
    %v176 = vmul.f32 %v171, %v175
    %v177 = vmul.f32 %v170, %v176
    %vm178 = vcmp.eq.f32.partialorder %v170, inf
    %v179 = vsel %vm178, %v170, %v177
    %vm180 = vcmp.eq.f32.partialorder %v170, 0.0
    %v181 = vand.u32 %v170, 2147483648
    %v182 = vsel %vm180, %v181, %v179
    %s183 = sld [smem:[#allocation2]]
    %v184 = vstv %s183
    %v185 = vrcp.pop %v184
    %v186 = vmul.f32 %v184, %v185
    %v187 = vsub.f32 1.0, %v186
    %v188 = vmul.f32 %v185, %v187
    %v189 = vadd.f32 %v185, %v188
    %vm190 = vweird.f32 %v184
    %vm191 = vweird.f32 %v185
    %vm192 = vmor %vm190, %vm191
    %v193 = vsel %vm192, %v185, %v189
    %v194 = vand.u32 2147483647, %v184
    %vm195 = vcmp.eq.f32.partialorder %v194, 8.507059e+37
    %v196 = vand.u32 %v184, 2147483648
    %v197 = vor.u32 1.1754944e-38, %v196
    %v198 = vsel %vm195, %v197, %v193
    %s199 = vtos %v198
    %s200 = smul.f32 -1.0, %s199
    %v201 = vstv %s200
    %v202 = vmul.f32 %v182, %v201
    %203 = vst [vmem:[#allocation8] sm:$0xff] %v202
    // Predicated region
    $region22: #{tpu_custom_call.1} parent=1 // pred_check
      _
    $region23: #{tpu_custom_call.1} parent=1 // pred_check_branch
      %205 = sbr.rel (0) target = $region25
    $region24: #{tpu_custom_call.1} parent=1 // pred_region
      %207 = vsyncadd [#allocation5], 0
      %s209 = sshll.u32 [#allocation8], 4
      %s210 = int_to_ptr.vmem [resolvable:$true] %s209
      %s211 = sshll.u32 %s3, 4
      %s212 = int_to_ptr.hbm [resolvable:$true] %s211
      %214 = dma.vmem_to_hbm [thread:$0]  %s210, 128, %s212, [#allocation5]
    $region25: #{tpu_custom_call.1} parent=1 // pred_fallthru
      _
    // Predicated region
    $region26: #{tpu_custom_call.1} parent=1 // pred_check
      _
    $region27: #{tpu_custom_call.1} parent=1 // pred_check_branch
      %216 = sbr.rel (0) target = $region29
    $region28: #{tpu_custom_call.1} parent=1 // pred_region
      %218 = dma.done [#allocation5], 128
    $region29: #{tpu_custom_call.1} parent=1 // pred_fallthru
      _
    %219 = vsyncpa [#allocation4], 1
    %220 = vsyncpa [#allocation7], 1
    %221 = vsyncpa [#allocation5], 1

</llo_original>
